<compile_context>
chip_gen: v6e
topology: v6e:2x2x1
jax: 0.10.0
libtpu: 0.0.40
codegen_flags: <defaults>
</compile_context>

<pallas_src>
import functools

import jax
import jax.numpy as jnp
from jax.experimental import pallas as pl
from jax.experimental.pallas import tpu as pltpu


# ----------------------------------------------------------------------------
# VMEM budgeting
# ----------------------------------------------------------------------------
def _vmem_budget_bytes():
    """Usable VMEM budget for this chip generation (with headroom)."""
    try:
        cap = int(pltpu.get_tpu_info().vmem_capacity_bytes)   # 128 MiB v5e/v6e, 64 MiB v7x
    except Exception:
        cap = 64 * 1024 * 1024                                # conservative (v7x-sized) fallback
    return max((cap * 3) // 4, 24 * 1024 * 1024)


# ----------------------------------------------------------------------------
# Fast path: everything resident in VMEM, single invocation, x read once.
# ----------------------------------------------------------------------------
def _attention_pooling_fused_kernel(x_ref, w_ref, o_ref, *, inv_n):
    x = x_ref[...]                                             # (N, dim), native dtype
    n = x.shape[0]

    # Column sum on the MXU: ones(1, N) @ x  -> (1, dim) f32.
    ones = jnp.ones((1, n), dtype=x.dtype)
    colsum = jax.lax.dot_general(
        ones, x, dimension_numbers=(((1,), (0,)), ((), ())),
        preferred_element_type=jnp.float32)
    mean = colsum * inv_n                                      # (1, dim) f32

    # transformed_global (row form): (W @ mean)^T == mean @ W^T, one MXU matvec.
    w = w_ref[...]
    tg = jax.lax.dot_general(
        mean.astype(w.dtype), w, dimension_numbers=(((1,), (1,)), ((), ())),
        preferred_element_type=jnp.float32)                    # (1, dim) f32

    # scores = x @ transformed_global  (contract over dim) -> (N, 1)
    scores = jax.lax.dot_general(
        x, tg.astype(x.dtype), dimension_numbers=(((1,), (1,)), ((), ())),
        preferred_element_type=jnp.float32)
    weight = jax.nn.sigmoid(scores)                            # (N, 1) f32

    # pooled = weight^T @ x  (contract over N) -> (1, dim) f32
    pooled = jax.lax.dot_general(
        weight.astype(x.dtype), x, dimension_numbers=(((0,), (0,)), ((), ())),
        preferred_element_type=jnp.float32)
    o_ref[...] = pooled.astype(o_ref.dtype)


def _attention_pooling_fused(x, w, inv_n, budget):
    n, dim = x.shape
    x_bytes = n * dim * x.dtype.itemsize
    w_bytes = dim * dim * w.dtype.itemsize
    vmem_limit = int(min(budget, max(32 << 20, 2 * (x_bytes + w_bytes) + (8 << 20))))

    cost = pl.CostEstimate(
        flops=6 * n * dim + 2 * dim * dim,
        transcendentals=n,
        bytes_accessed=x_bytes + w_bytes + dim * 4,
    )
    kernel = functools.partial(_attention_pooling_fused_kernel, inv_n=inv_n)
    return pl.pallas_call(
        kernel,
        out_shape=jax.ShapeDtypeStruct((1, dim), jnp.float32),
        in_specs=[pl.BlockSpec(memory_space=pltpu.MemorySpace.VMEM),
                  pl.BlockSpec(memory_space=pltpu.MemorySpace.VMEM)],
        out_specs=pl.BlockSpec(memory_space=pltpu.MemorySpace.VMEM),
        compiler_params=pltpu.CompilerParams(vmem_limit_bytes=vmem_limit),
        cost_estimate=cost,
    )(x, w)


# ----------------------------------------------------------------------------
# Streaming path: two-phase grid over N-tiles (only when x does not fit VMEM).
# ----------------------------------------------------------------------------
def _attention_pooling_stream_kernel(x_ref, w_ref, o_ref, acc_ref, tg_ref, *,
                                     inv_n, n_rows, tile_n, ragged):
    phase = pl.program_id(0)            # 0: mean pass, 1: weighted-sum pass
    i = pl.program_id(1)                # N-tile index
    nt = pl.num_programs(1)

    def load_tile():
        xt = x_ref[...]                                        # (tile_n, dim) native dtype
        if ragged:
            # Mask rows past the true N (last tile only can be ragged; the
            # select is cheap VPU filler on a mem-bound kernel).
            row = jax.lax.broadcasted_iota(jnp.int32, xt.shape, 0)
            valid = (row + i * tile_n) < n_rows
            xt = jnp.where(valid, xt, jnp.zeros_like(xt))
        return xt

    @pl.when(jnp.logical_and(phase == 0, i == 0))
    def _init():
        acc_ref[...] = jnp.zeros_like(acc_ref)

    @pl.when(phase == 0)
    def _mean_pass():
        xt = load_tile()
        # Column sum on the MXU: ones(1, tile_n) @ x_tile -> (1, dim) f32.
        ones = jnp.ones((1, tile_n), dtype=xt.dtype)
        acc_ref[...] += jax.lax.dot_general(
            ones, xt, dimension_numbers=(((1,), (0,)), ((), ())),
            preferred_element_type=jnp.float32)

    @pl.when(jnp.logical_and(phase == 0, i == nt - 1))
    def _finish_mean():
        mean = acc_ref[...] * inv_n                            # (1, dim) f32

        # W lives in HBM (memory_space=pl.ANY); copy it into VMEM exactly once
        # for the single mat-vec, then release the buffer.
        def scoped(w_vmem, sem):
            cp = pltpu.make_async_copy(w_ref, w_vmem, sem)
            cp.start()
            cp.wait()
            tg_ref[...] = jax.lax.dot_general(
                mean.astype(w_vmem.dtype), w_vmem[...],
                dimension_numbers=(((1,), (1,)), ((), ())),
                preferred_element_type=jnp.float32)

        pl.run_scoped(scoped, pltpu.VMEM(w_ref.shape, w_ref.dtype),
                      pltpu.SemaphoreType.DMA)
        acc_ref[...] = jnp.zeros_like(acc_ref)                 # reuse as pooled acc

    @pl.when(phase == 1)
    def _pool_pass():
        xt = load_tile()
        # scores = x @ transformed_global  (MXU, contract over dim) -> (tile_n, 1)
        scores = jax.lax.dot_general(
            xt, tg_ref[...].astype(xt.dtype),
            dimension_numbers=(((1,), (1,)), ((), ())),
            preferred_element_type=jnp.float32)
        weight = jax.nn.sigmoid(scores)                        # (tile_n, 1) f32
        # pooled += weight^T @ x  (MXU, contract over tile_n) -> (1, dim)
        acc_ref[...] += jax.lax.dot_general(
            weight.astype(xt.dtype), xt,
            dimension_numbers=(((0,), (0,)), ((), ())),
            preferred_element_type=jnp.float32)

    @pl.when(jnp.logical_and(phase == 1, i == nt - 1))
    def _write_out():
        o_ref[...] = acc_ref[...].astype(o_ref.dtype)


def _attention_pooling_streaming(x, w, inv_n, budget, max_tile_rows):
    n, dim = x.shape
    itemsize = x.dtype.itemsize
    w_bytes = dim * dim * w.dtype.itemsize

    # Budget: 2x double-buffered x tile + transient W copy (run_scoped) + small scratch.
    avail = max(budget - w_bytes - (2 << 20), 4 << 20)
    tile_bytes_target = min(8 << 20, avail // 3)
    tile_n = max(8, (tile_bytes_target // max(dim * itemsize, 1)) // 8 * 8)
    if max_tile_rows is not None:
        tile_n = min(tile_n, max(8, (max_tile_rows // 8) * 8))
    tile_n = min(tile_n, ((n + 7) // 8) * 8)
    num_tiles = -(-n // tile_n)
    ragged = (n % tile_n) != 0

    tile_bytes = tile_n * dim * itemsize
    vmem_limit = int(min(budget,
                         max(16 << 20, 2 * tile_bytes + w_bytes + (4 << 20))))

    cost = pl.CostEstimate(
        flops=6 * n * dim + 2 * dim * dim,
        transcendentals=n,
        bytes_accessed=2 * n * dim * itemsize + w_bytes + dim * 4,
    )
    kernel = functools.partial(
        _attention_pooling_stream_kernel,
        inv_n=inv_n, n_rows=n, tile_n=tile_n, ragged=ragged)

    return pl.pallas_call(
        kernel,
        out_shape=jax.ShapeDtypeStruct((1, dim), jnp.float32),
        grid_spec=pltpu.PrefetchScalarGridSpec(
            num_scalar_prefetch=0,
            grid=(2, num_tiles),                                  # (phase, N-tile)
            in_specs=[
                pl.BlockSpec((tile_n, dim), lambda p, i: (i, 0)),  # x: tiled over N
                pl.BlockSpec(memory_space=pl.ANY),                 # W: raw HBM, DMA'd once
            ],
            out_specs=pl.BlockSpec((1, dim), lambda p, i: (0, 0)),  # lane-dense row
            scratch_shapes=[
                pltpu.VMEM((1, dim), jnp.float32),   # accumulator (colsum, then pooled)
                pltpu.VMEM((1, dim), jnp.float32),   # transformed_global (row form)
            ],
        ),
        compiler_params=pltpu.CompilerParams(
            dimension_semantics=("arbitrary", "arbitrary"),        # carried accumulator
            vmem_limit_bytes=vmem_limit),
        cost_estimate=cost,
    )(x, w)


# ----------------------------------------------------------------------------
# Public wrapper
# ----------------------------------------------------------------------------
def attention_pooling(x, w, *, max_tile_rows=None, force_streaming=False):
    """x: (N, dim), w: (dim, dim)  ->  (dim, 1), matching the PyTorch module."""
    n, dim = x.shape
    assert w.shape == (dim, dim)
    inv_n = 1.0 / n

    budget = _vmem_budget_bytes()
    x_bytes = n * dim * x.dtype.itemsize
    w_bytes = dim * dim * w.dtype.itemsize

    # Fast path when x + W fit comfortably on-chip: single HBM pass over x,
    # no grid, no padding copy.  Otherwise stream x over N-tiles (two passes).
    use_fused = (not force_streaming) and (x_bytes + w_bytes + (2 << 20) <= budget // 2)
    if use_fused:
        out_row = _attention_pooling_fused(x, w, inv_n, budget)
    else:
        out_row = _attention_pooling_streaming(x, w, inv_n, budget, max_tile_rows)

    # Back to the PyTorch output convention (dim, 1) — single reshape outside.
    return out_row.reshape(dim, 1).astype(x.dtype)


def attention_pooling_ref(x, w):
    """Pure-JAX reference mirroring the PyTorch forward exactly."""
    mean = x.mean(axis=0)                                  # (dim,)
    transformed_global = w @ mean[:, None]                 # (dim, 1)
    weight = jax.nn.sigmoid(x @ transformed_global)        # (N, 1)
    graph_represent = weight * x                           # (N, dim)
    return graph_represent.sum(axis=0)[:, None]            # (dim, 1)


if __name__ == "__main__":
    key = jax.random.PRNGKey(0)
    k_x, k_w, k_x2, k_w2 = jax.random.split(key, 4)

    # Case 1: small shapes consistent with the module (N nodes, hidden dim).
    N, DIM = 8, 32
    x = jax.random.normal(k_x, (N, DIM), dtype=jnp.float32)
    bound = (6.0 / (DIM + DIM)) ** 0.5     # xavier_uniform_ on a (dim, dim) matrix
    w = jax.random.uniform(k_w, (DIM, DIM), dtype=jnp.float32,
                           minval=-bound, maxval=bound)
    out = attention_pooling(x, w)
    jax.block_until_ready(out)
    ref = attention_pooling_ref(x, w)
    assert out.shape == (DIM, 1), out.shape
    assert jnp.allclose(out, ref, atol=1e-5, rtol=1e-5), \
        f"max err {jnp.max(jnp.abs(out - ref))}"

    # Case 2: non-aligned N / dim through the fused single-block fast path.
    N2, DIM2 = 70, 96
    x2 = jax.random.normal(k_x2, (N2, DIM2), dtype=jnp.float32)
    bound2 = (6.0 / (DIM2 + DIM2)) ** 0.5
    w2 = jax.random.uniform(k_w2, (DIM2, DIM2), dtype=jnp.float32,
                            minval=-bound2, maxval=bound2)
    out2 = attention_pooling(x2, w2)
    jax.block_until_ready(out2)
    ref2 = attention_pooling_ref(x2, w2)
    assert out2.shape == (DIM2, 1), out2.shape
    assert jnp.allclose(out2, ref2, atol=1e-4, rtol=1e-4), \
        f"max err {jnp.max(jnp.abs(out2 - ref2))}"

    # Case 3: force the streaming two-phase path (several tiles + ragged last
    # tile + run_scoped W DMA) on the same data to validate the large-N code.
    out3 = attention_pooling(x2, w2, max_tile_rows=32, force_streaming=True)
    jax.block_until_ready(out3)
    assert out3.shape == (DIM2, 1), out3.shape
    assert jnp.allclose(out3, ref2, atol=1e-4, rtol=1e-4), \
        f"max err {jnp.max(jnp.abs(out3 - ref2))}"

    print("KERNEL_OK")
</pallas_src>

<mosaic_0001>
module attributes {stable_mosaic.version = 11 : i64} {
  func.func @_attention_pooling_fused_kernel(%arg0: memref<8x32xf32, #tpu.memory_space<vmem>>, %arg1: memref<32x32xf32, #tpu.memory_space<vmem>>, %arg2: memref<1x32xf32, #tpu.memory_space<vmem>>) attributes {dimension_semantics = [], scalar_prefetch = 0 : i64, scratch_operands = 0 : i64, tpu.core_type = #tpu.core_type<tc>} {
    %c0 = arith.constant 0 : index
    %c0_0 = arith.constant 0 : index
    %0 = vector.load %arg0[%c0, %c0_0] : memref<8x32xf32, #tpu.memory_space<vmem>>, vector<8x32xf32>
    %cst = arith.constant 1.000000e+00 : f32
    %1 = vector.broadcast %cst : f32 to vector<1x8xf32>
    %cst_1 = arith.constant dense<0.000000e+00> : vector<1x32xf32>
    %2 = tpu.matmul %1, %0, %cst_1 {dimension_numbers = #tpu.dot_dimension_numbers<[1], [0], [0], [1], [0, 0, 1, 1], [], []>} : vector<1x8xf32>, vector<8x32xf32>, vector<1x32xf32> -> vector<1x32xf32>
    %cst_2 = arith.constant 1.250000e-01 : f32
    %3 = vector.broadcast %cst_2 : f32 to vector<1x32xf32>
    %4 = arith.mulf %2, %3 : vector<1x32xf32>
    %c0_3 = arith.constant 0 : index
    %c0_4 = arith.constant 0 : index
    %5 = vector.load %arg1[%c0_3, %c0_4] : memref<32x32xf32, #tpu.memory_space<vmem>>, vector<32x32xf32>
    %cst_5 = arith.constant dense<0.000000e+00> : vector<1x32xf32>
    %6 = tpu.matmul %4, %5, %cst_5 {dimension_numbers = #tpu.dot_dimension_numbers<[1], [1], [0], [0], [0, 0, 1, 0], [], []>} : vector<1x32xf32>, vector<32x32xf32>, vector<1x32xf32> -> vector<1x32xf32>
    %cst_6 = arith.constant dense<0.000000e+00> : vector<8x1xf32>
    %7 = tpu.matmul %0, %6, %cst_6 {dimension_numbers = #tpu.dot_dimension_numbers<[1], [1], [0], [0], [0, 0, 1, 0], [], []>} : vector<8x32xf32>, vector<1x32xf32>, vector<8x1xf32> -> vector<8x1xf32>
    %8 = arith.negf %7 : vector<8x1xf32>
    %9 = math.exp %8 : vector<8x1xf32>
    %cst_7 = arith.constant 1.000000e+00 : f32
    %10 = vector.broadcast %cst_7 : f32 to vector<8x1xf32>
    %11 = arith.addf %10, %9 : vector<8x1xf32>
    %12 = arith.divf %10, %11 : vector<8x1xf32>
    %cst_8 = arith.constant dense<0.000000e+00> : vector<1x32xf32>
    %13 = tpu.matmul %12, %0, %cst_8 {dimension_numbers = #tpu.dot_dimension_numbers<[0], [0], [1], [1], [0, 1, 1, 1], [], []>} : vector<8x1xf32>, vector<8x32xf32>, vector<1x32xf32> -> vector<1x32xf32>
    %c0_9 = arith.constant 0 : index
    %c0_10 = arith.constant 0 : index
    %14 = vector.load %arg2[%c0_9, %c0_10] : memref<1x32xf32, #tpu.memory_space<vmem>>, vector<1x32xf32>
    tpu.vector_store %arg2[%c0_9, %c0_10], %13 {strides = array<i32>} : memref<1x32xf32, #tpu.memory_space<vmem>>, vector<1x32xf32>,
    return
  }
}

</mosaic_0001>

<llo_original>
// kernel: tpu_custom_call.1
$region0: #{tpu_custom_call.1}
  #allocation0 [shape = 'u32[]', space=smem, size = 0x4, offset = 0x4, fixed_abs, tag = 'smem constant byte address 0x4 - core index']
  #allocation1 [shape = 'u32[144,128]{1,0:T(1,128)}', space=vmem, size = 0x12000, scoped, tag = 'internal scratch']
  %s0 = inlined_call_operand.hbm [shape: f32[8,32], index: 0, kind: input, shape index: {}]
  %s1 = inlined_call_operand.hbm [shape: f32[32,32], index: 1, kind: input, shape index: {}]
  %s2 = inlined_call_operand.hbm [shape: f32[1,32], index: 2, kind: output, shape index: {}]
  %s3 = sld [smem:[#allocation0]]
  $region26: #{tpu_custom_call.1} parent=0
    _
  %s5 = ssub.s32 1, %s3
  %s6 = scalar_select 0, %s5, %s3
  $region1: #{tpu_custom_call.1} parent=0
    #allocation2 [shape = 'u8[4096]{0}', space=vmem, size = 0x1000, scoped, tag = 'input window, operand 0, single buffered']
    #allocation3 [shape = 's32[1]{0}', space=sflag, size = 0x4, scoped, tag = 'scoped memory for tpu_custom_call.1']
    #allocation4 [shape = 's32[1]{0}', space=sflag, size = 0x4, scoped, tag = 'scoped memory for tpu_custom_call.1']
    #allocation5 [shape = 'u8[16384]{0}', space=vmem, size = 0x4000, scoped, tag = 'input window, operand 1, single buffered']
    #allocation6 [shape = 's32[1]{0}', space=sflag, size = 0x4, scoped, tag = 'scoped memory for tpu_custom_call.1']
    #allocation7 [shape = 'u8[512]{0}', space=vmem, size = 0x400, scoped, tag = 'output window, operand 0, single buffered']
    %7 = vsyncpa [#allocation3], 0
    %8 = vsyncpa [#allocation6], 0
    %9 = vsyncpa [#allocation4], 0
    // Predicated region
    $region2: #{tpu_custom_call.1} parent=1 // pred_check
      _
    $region3: #{tpu_custom_call.1} parent=1 // pred_check_branch
      %11 = sbr.rel (0) target = $region5
    $region4: #{tpu_custom_call.1} parent=1 // pred_region
      %s13 = ssub.s32 128, 128
      %14 = vsyncadd [#allocation3], %s13
      %s16 = sshll.u32 [#allocation2], 4
      %s17 = int_to_ptr.vmem [resolvable:$true] %s16
      %19 = dma.hbm_to_vmem [thread:$0]  %s0, 128, %s17, [#allocation3]
    $region5: #{tpu_custom_call.1} parent=1 // pred_fallthru
      _
    // Predicated region
    $region6: #{tpu_custom_call.1} parent=1 // pred_check
      _
    $region7: #{tpu_custom_call.1} parent=1 // pred_check_branch
      %21 = sbr.rel (0) target = $region9
    $region8: #{tpu_custom_call.1} parent=1 // pred_region
      %s23 = ssub.s32 512, 512
      %24 = vsyncadd [#allocation6], %s23
      %s25 = sshll.u32 [#allocation5], 4
      %s26 = int_to_ptr.vmem [resolvable:$true] %s25
      %31 = dma.hbm_to_vmem [thread:$0]  %s1, 512, %s26, [#allocation6], 128, 128, 8
    $region9: #{tpu_custom_call.1} parent=1 // pred_fallthru
      _
    // Predicated region
    $region10: #{tpu_custom_call.1} parent=1 // pred_check
      _
    $region11: #{tpu_custom_call.1} parent=1 // pred_check_branch
      %33 = sbr.rel (0) target = $region13
    $region12: #{tpu_custom_call.1} parent=1 // pred_region
      %34 = dma.done [#allocation3], 128
    $region13: #{tpu_custom_call.1} parent=1 // pred_fallthru
      _
    // Predicated region
    $region14: #{tpu_custom_call.1} parent=1 // pred_check
      _
    $region15: #{tpu_custom_call.1} parent=1 // pred_check_branch
      %36 = sbr.rel (0) target = $region17
    $region16: #{tpu_custom_call.1} parent=1 // pred_region
      %37 = dma.done [#allocation6], 512
    $region17: #{tpu_custom_call.1} parent=1 // pred_fallthru
      _
    %v38 = vld [vmem:[#allocation2] sm:$0xff]
    %vm39 = vcmask 64512
    %v41 = vsel %vm39, 1.0, 0
    %43 = vmatprep.subr.mxu0 0.0
    %44 = vmatpush1.msra.mxu0 0.0
    %45 = vmatprep.subr.mxu0 0.0
    %46 = vmatpush1.msra.mxu0 0.0
    %47 = vmatprep.subr.mxu0 0.0
    %48 = vmatpush1.msra.mxu0 0.0
    %49 = vmatprep.subr.mxu0 0.0
    %50 = vmatpush1.msra.mxu0 0.0
    %51 = vmatprep.subr.mxu0 0.0
    %52 = vmatpush1.msra.mxu0 0.0
    %53 = vmatprep.subr.mxu0 0.0
    %54 = vmatpush1.msra.mxu0 0.0
    %55 = vmatprep.subr.mxu0 0.0
    %56 = vmatpush1.msra.mxu0 0.0
    %57 = vmatprep.subr.mxu0 0.0
    %58 = vmatpush1.msra.mxu0 0.0
    %59 = vmatprep.subr.mxu0 0.0
    %60 = vmatpush1.msra.mxu0 0.0
    %61 = vmatprep.subr.mxu0 0.0
    %62 = vmatpush1.msra.mxu0 0.0
    %63 = vmatprep.subr.mxu0 0.0
    %64 = vmatpush1.msra.mxu0 0.0
    %65 = vmatprep.subr.mxu0 0.0
    %66 = vmatpush1.msra.mxu0 0.0
    %67 = vmatprep.subr.mxu0 0.0
    %68 = vmatpush1.msra.mxu0 0.0
    %69 = vmatprep.subr.mxu0 0.0
    %70 = vmatpush1.msra.mxu0 0.0
    %71 = vmatprep.subr.mxu0 0.0
    %72 = vmatpush1.msra.mxu0 0.0
    %73 = vmatprep.subr.mxu0 0.0
    %74 = vmatpush1.msra.mxu0 %v38
    %75 = vmatprep.subr.mxu0 0.0
    %76 = vmatpush2.msra.mxu0 0.0
    %77 = vmatprep.subr.mxu0 0.0
    %78 = vmatpush2.msra.mxu0 0.0
    %79 = vmatprep.subr.mxu0 0.0
    %80 = vmatpush2.msra.mxu0 0.0
    %81 = vmatprep.subr.mxu0 0.0
    %82 = vmatpush2.msra.mxu0 0.0
    %83 = vmatprep.subr.mxu0 0.0
    %84 = vmatpush2.msra.mxu0 0.0
    %85 = vmatprep.subr.mxu0 0.0
    %86 = vmatpush2.msra.mxu0 0.0
    %87 = vmatprep.subr.mxu0 0.0
    %88 = vmatpush2.msra.mxu0 0.0
    %89 = vmatprep.subr.mxu0 0.0
    %90 = vmatpush2.msra.mxu0 0.0
    %91 = vmatprep.subr.mxu0 0.0
    %92 = vmatpush2.msra.mxu0 0.0
    %93 = vmatprep.subr.mxu0 0.0
    %94 = vmatpush2.msra.mxu0 0.0
    %95 = vmatprep.subr.mxu0 0.0
    %96 = vmatpush2.msra.mxu0 0.0
    %97 = vmatprep.subr.mxu0 0.0
    %98 = vmatpush2.msra.mxu0 0.0
    %99 = vmatprep.subr.mxu0 0.0
    %100 = vmatpush2.msra.mxu0 0.0
    %101 = vmatprep.subr.mxu0 0.0
    %102 = vmatpush2.msra.mxu0 0.0
    %103 = vmatprep.subr.mxu0 0.0
    %104 = vmatpush2.msra.mxu0 0.0
    %105 = vmatprep.subr.mxu0 0.0
    %106 = vmatpush2.msra.mxu0 0.0
    %107 = vmatprep.mubr.f32.mxu0 0.0
    %108 = vmatmul.mubr.f32.gmra.mxu0 %v41
    %v109 = vpop.f32.mrf.mxu0
    %v110 = vadd.f32 0.0, %v109
    %v111 = vpop.f32.mrf.mxu0
    %112 = vdwg.mxu0
    %v113 = vmul.f32 %v110, 0.125
    %v114 = vld [vmem:[#allocation5] sm:$0xff]
    %v115 = vld [vmem:[#allocation5 + $0x8] sm:$0xff]
    %v116 = vld [vmem:[#allocation5 + $0x10] sm:$0xff]
    %v117 = vld [vmem:[#allocation5 + $0x18] sm:$0xff]
    %vm118 = vcmask 261120
    %v120 = vsel %vm118, %v113, 0
    %v123 = vsel %vm118, %v114, 0
    %v126 = vsel %vm118, %v115, 0
    %v129 = vsel %vm118, %v116, 0
    %v132 = vsel %vm118, %v117, 0
    %134 = vmatprep.subr.mxu0 0.0
    %135 = vmatpush1.xpose.msra.mxu0 0.0
    %136 = vmatprep.subr.mxu0 0.0
    %137 = vmatpush1.xpose.msra.mxu0 0.0
    %138 = vmatprep.subr.mxu0 0.0
    %139 = vmatpush1.xpose.msra.mxu0 0.0
    %140 = vmatprep.subr.mxu0 0.0
    %141 = vmatpush1.xpose.msra.mxu0 0.0
    %142 = vmatprep.subr.mxu0 0.0
    %143 = vmatpush1.xpose.msra.mxu0 0.0
    %144 = vmatprep.subr.mxu0 0.0
    %145 = vmatpush1.xpose.msra.mxu0 0.0
    %146 = vmatprep.subr.mxu0 0.0
    %147 = vmatpush1.xpose.msra.mxu0 0.0
    %148 = vmatprep.subr.mxu0 0.0
    %149 = vmatpush1.xpose.msra.mxu0 0.0
    %150 = vmatprep.subr.mxu0 0.0
    %151 = vmatpush1.xpose.msra.mxu0 0.0
    %152 = vmatprep.subr.mxu0 0.0
    %153 = vmatpush1.xpose.msra.mxu0 0.0
    %154 = vmatprep.subr.mxu0 0.0
    %155 = vmatpush1.xpose.msra.mxu0 0.0
    %156 = vmatprep.subr.mxu0 0.0
    %157 = vmatpush1.xpose.msra.mxu0 0.0
    %158 = vmatprep.subr.mxu0 0.0
    %159 = vmatpush1.xpose.msra.mxu0 %v132
    %160 = vmatprep.subr.mxu0 0.0
    %161 = vmatpush1.xpose.msra.mxu0 %v129
    %162 = vmatprep.subr.mxu0 0.0
    %163 = vmatpush1.xpose.msra.mxu0 %v126
    %164 = vmatprep.subr.mxu0 0.0
    %165 = vmatpush1.xpose.msra.mxu0 %v123
    %166 = vmatprep.subr.mxu0 0.0
    %167 = vmatpush2.xpose.msra.mxu0 0.0
    %168 = vmatprep.subr.mxu0 0.0
    %169 = vmatpush2.xpose.msra.mxu0 0.0
    %170 = vmatprep.subr.mxu0 0.0
    %171 = vmatpush2.xpose.msra.mxu0 0.0
    %172 = vmatprep.subr.mxu0 0.0
    %173 = vmatpush2.xpose.msra.mxu0 0.0
    %174 = vmatprep.subr.mxu0 0.0
    %175 = vmatpush2.xpose.msra.mxu0 0.0
    %176 = vmatprep.subr.mxu0 0.0
    %177 = vmatpush2.xpose.msra.mxu0 0.0
    %178 = vmatprep.subr.mxu0 0.0
    %179 = vmatpush2.xpose.msra.mxu0 0.0
    %180 = vmatprep.subr.mxu0 0.0
    %181 = vmatpush2.xpose.msra.mxu0 0.0
    %182 = vmatprep.subr.mxu0 0.0
    %183 = vmatpush2.xpose.msra.mxu0 0.0
    %184 = vmatprep.subr.mxu0 0.0
    %185 = vmatpush2.xpose.msra.mxu0 0.0
    %186 = vmatprep.subr.mxu0 0.0
    %187 = vmatpush2.xpose.msra.mxu0 0.0
    %188 = vmatprep.subr.mxu0 0.0
    %189 = vmatpush2.xpose.msra.mxu0 0.0
    %190 = vmatprep.subr.mxu0 0.0
    %191 = vmatpush2.xpose.msra.mxu0 0.0
    %192 = vmatprep.subr.mxu0 0.0
    %193 = vmatpush2.xpose.msra.mxu0 0.0
    %194 = vmatprep.subr.mxu0 0.0
    %195 = vmatpush2.xpose.msra.mxu0 0.0
    %196 = vmatprep.subr.mxu0 0.0
    %197 = vmatpush2.xpose.msra.mxu0 0.0
    %198 = vmatprep.mubr.f32.mxu0 0.0
    %199 = vmatmul.mubr.f32.gmra.mxu0 %v120
    %v200 = vpop.f32.mrf.mxu0
    %v201 = vadd.f32 0.0, %v200
    %v202 = vpop.f32.mrf.mxu0
    %203 = vdwg.mxu0
    %v204 = vlaneseq
    %v205 = vshrl.u32 %v204, 7
    %v206 = vsub.s32 0, %v205
    %v207 = vrot.slane %v201, %v206
    %v208 = vmul.f32 %v38, %v207
    %v209 = vsel %vm118, %v208, 0.0
    %210 = vadd.xlane.f32.xlu0 %v209
    %v211 = vpop.xlane.xlu0 %210
    %v212 = vxor.u32 %v211, 2147483648
    %v213 = vmul.f32 %v212, 1.442695
    %v214 = vpow.pop %v213
    %v215 = vadd.f32 %v214, 1.0
    %v216 = vrcp.pop %v215
    %v217 = vmul.f32 1.0, %v216
    %218 = vxpose.xlu0.b32.start [1/16] %v217, 128
    %219 = vxpose.xlu0.b32.cont [2/16] 0.0, 128
    %220 = vxpose.xlu0.b32.cont [3/16] 0.0, 128
    %221 = vxpose.xlu0.b32.cont [4/16] 0.0, 128
    %222 = vxpose.xlu0.b32.cont [5/16] 0.0, 128
    %223 = vxpose.xlu0.b32.cont [6/16] 0.0, 128
    %224 = vxpose.xlu0.b32.cont [7/16] 0.0, 128
    %225 = vxpose.xlu0.b32.cont [8/16] 0.0, 128
    %226 = vxpose.xlu0.b32.cont [9/16] 0.0, 128
    %227 = vxpose.xlu0.b32.cont [10/16] 0.0, 128
    %228 = vxpose.xlu0.b32.cont [11/16] 0.0, 128
    %229 = vxpose.xlu0.b32.cont [12/16] 0.0, 128
    %230 = vxpose.xlu0.b32.cont [13/16] 0.0, 128
    %231 = vxpose.xlu0.b32.cont [14/16] 0.0, 128
    %232 = vxpose.xlu0.b32.cont [15/16] 0.0, 128
    %233 = vxpose.xlu0.b32.end [16/16] 0.0, 128
    %v234 = vpop.trf.xlu0
    %v235 = vpop.trf.xlu0
    %v236 = vpop.trf.xlu0
    %v237 = vpop.trf.xlu0
    %v238 = vpop.trf.xlu0
    %v239 = vpop.trf.xlu0
    %v240 = vpop.trf.xlu0
    %v241 = vpop.trf.xlu0
    %v242 = vpop.trf.xlu0
    %v243 = vpop.trf.xlu0
    %v244 = vpop.trf.xlu0
    %v245 = vpop.trf.xlu0
    %v246 = vpop.trf.xlu0
    %v247 = vpop.trf.xlu0
    %v248 = vpop.trf.xlu0
    %v249 = vpop.trf.xlu0
    %v251 = vsel %vm39, %v234, 0
    %253 = vmatprep.subr.mxu0 0.0
    %254 = vmatpush1.msra.mxu0 0.0
    %255 = vmatprep.subr.mxu0 0.0
    %256 = vmatpush1.msra.mxu0 0.0
    %257 = vmatprep.subr.mxu0 0.0
    %258 = vmatpush1.msra.mxu0 0.0
    %259 = vmatprep.subr.mxu0 0.0
    %260 = vmatpush1.msra.mxu0 0.0
    %261 = vmatprep.subr.mxu0 0.0
    %262 = vmatpush1.msra.mxu0 0.0
    %263 = vmatprep.subr.mxu0 0.0
    %264 = vmatpush1.msra.mxu0 0.0
    %265 = vmatprep.subr.mxu0 0.0
    %266 = vmatpush1.msra.mxu0 0.0
    %267 = vmatprep.subr.mxu0 0.0
    %268 = vmatpush1.msra.mxu0 0.0
    %269 = vmatprep.subr.mxu0 0.0
    %270 = vmatpush1.msra.mxu0 0.0
    %271 = vmatprep.subr.mxu0 0.0
    %272 = vmatpush1.msra.mxu0 0.0
    %273 = vmatprep.subr.mxu0 0.0
    %274 = vmatpush1.msra.mxu0 0.0
    %275 = vmatprep.subr.mxu0 0.0
    %276 = vmatpush1.msra.mxu0 0.0
    %277 = vmatprep.subr.mxu0 0.0
    %278 = vmatpush1.msra.mxu0 0.0
    %279 = vmatprep.subr.mxu0 0.0
    %280 = vmatpush1.msra.mxu0 0.0
    %281 = vmatprep.subr.mxu0 0.0
    %282 = vmatpush1.msra.mxu0 0.0
    %283 = vmatprep.subr.mxu0 0.0
    %284 = vmatpush1.msra.mxu0 %v38
    %285 = vmatprep.subr.mxu0 0.0
    %286 = vmatpush2.msra.mxu0 0.0
    %287 = vmatprep.subr.mxu0 0.0
    %288 = vmatpush2.msra.mxu0 0.0
    %289 = vmatprep.subr.mxu0 0.0
    %290 = vmatpush2.msra.mxu0 0.0
    %291 = vmatprep.subr.mxu0 0.0
    %292 = vmatpush2.msra.mxu0 0.0
    %293 = vmatprep.subr.mxu0 0.0
    %294 = vmatpush2.msra.mxu0 0.0
    %295 = vmatprep.subr.mxu0 0.0
    %296 = vmatpush2.msra.mxu0 0.0
    %297 = vmatprep.subr.mxu0 0.0
    %298 = vmatpush2.msra.mxu0 0.0
    %299 = vmatprep.subr.mxu0 0.0
    %300 = vmatpush2.msra.mxu0 0.0
    %301 = vmatprep.subr.mxu0 0.0
    %302 = vmatpush2.msra.mxu0 0.0
    %303 = vmatprep.subr.mxu0 0.0
    %304 = vmatpush2.msra.mxu0 0.0
    %305 = vmatprep.subr.mxu0 0.0
    %306 = vmatpush2.msra.mxu0 0.0
    %307 = vmatprep.subr.mxu0 0.0
    %308 = vmatpush2.msra.mxu0 0.0
    %309 = vmatprep.subr.mxu0 0.0
    %310 = vmatpush2.msra.mxu0 0.0
    %311 = vmatprep.subr.mxu0 0.0
    %312 = vmatpush2.msra.mxu0 0.0
    %313 = vmatprep.subr.mxu0 0.0
    %314 = vmatpush2.msra.mxu0 0.0
    %315 = vmatprep.subr.mxu0 0.0
    %316 = vmatpush2.msra.mxu0 0.0
    %317 = vmatprep.mubr.f32.mxu0 0.0
    %318 = vmatmul.mubr.f32.gmra.mxu0 %v251
    %v319 = vpop.f32.mrf.mxu0
    %v320 = vadd.f32 0.0, %v319
    %v321 = vpop.f32.mrf.mxu0
    %322 = vdwg.mxu0
    %vm323 = vcmask 253952
    %324 = vst.msk [vmem:[#allocation7] sm:$0x1] %vm323, %v320
    // Predicated region
    $region18: #{tpu_custom_call.1} parent=1 // pred_check
      _
    $region19: #{tpu_custom_call.1} parent=1 // pred_check_branch
      %326 = sbr.rel (0) target = $region21
    $region20: #{tpu_custom_call.1} parent=1 // pred_region
      %s328 = ssub.s32 16, 16
      %329 = vsyncadd [#allocation4], %s328
      %s331 = sshll.u32 [#allocation7], 4
      %s332 = int_to_ptr.vmem [resolvable:$true] %s331
      %334 = dma.vmem_to_hbm [thread:$0]  %s332, 16, %s2, [#allocation4]
    $region21: #{tpu_custom_call.1} parent=1 // pred_fallthru
      _
    // Predicated region
    $region22: #{tpu_custom_call.1} parent=1 // pred_check
      _
    $region23: #{tpu_custom_call.1} parent=1 // pred_check_branch
      %336 = sbr.rel (0) target = $region25
    $region24: #{tpu_custom_call.1} parent=1 // pred_region
      %337 = dma.done [#allocation4], 16
    $region25: #{tpu_custom_call.1} parent=1 // pred_fallthru
      _
    %338 = vsyncpa [#allocation3], 1
    %339 = vsyncpa [#allocation6], 1
    %340 = vsyncpa [#allocation4], 1

</llo_original>
